<compile_context>
chip_gen: v6e
topology: v6e:2x2x1
jax: 0.10.0
libtpu: 0.0.40
codegen_flags: <defaults>
</compile_context>

<pallas_src>
import functools

import jax
import jax.numpy as jnp
from jax.experimental import pallas as pl
from jax.experimental.pallas import tpu as pltpu


def critic_kernel(x_ref, w1_ref, b1_ref, w2_ref, b2_ref, o_ref):
    # x_ref : (TB, D)  streamed activation tile (contiguous rows of `state`)
    # w1_ref: (D, H)   hidden-layer weight, resident in VMEM
    # b1_ref: (1, H)   hidden-layer bias, resident (f32)
    # w2_ref: (1, H)   output-layer weight row, resident (f32)
    # b2_ref: (1,)     output-layer bias, scalar in SMEM
    # o_ref : (TB, 1)  per-row value for this batch tile
    h = jnp.dot(x_ref[...], w1_ref[...],
                preferred_element_type=jnp.float32)          # (TB, H) on MXU, f32 accum
    h = jnp.maximum(h + b1_ref[...], 0.0)                    # bias + ReLU on VPU
    # Output projection: VPU broadcast-multiply + cross-lane (XLU) reduce.
    v = jnp.sum(h * w2_ref[...], axis=1, keepdims=True)      # (TB, 1)
    o_ref[...] = (v + b2_ref[0]).astype(o_ref.dtype)


def _round_up(x, m):
    return -(-x // m) * m


def _has_megacore():
    """Best-effort: does this chip expose 2 TensorCores behind one device?"""
    try:
        kind = jax.devices()[0].device_kind.lower()
    except Exception:
        return False
    return any(tag in kind for tag in ("v4", "v5p", "7x", "v7"))


def _choose_tile(batch, block_b):
    block_b = max(8, (block_b // 8) * 8)
    if batch > block_b:
        return block_b                      # multiple of 8 -> clean sublane tiles
    # Whole batch fits in one tile.  On megacore chips split large batches so
    # the "parallel" grid axis shards across both TensorCores (one extra grid
    # step costs ~0.35 us; the split is skipped for small batches).
    if batch >= 1024 and _has_megacore():
        return _round_up(pl.cdiv(batch, 2), 8)
    return batch                            # block == full extent is always legal


def _vmem_limit_bytes(tb, d, h, in_itemsize):
    """Padded, double-buffered footprint + headroom (no blanket 32 MiB floor)."""
    def padded(rows, cols, itemsize):
        return _round_up(rows, 8) * _round_up(cols, 128) * itemsize

    need = (2 * padded(tb, d, in_itemsize)      # streamed activation tiles (x2 buffers)
            + 2 * padded(tb, 1, 4)              # streamed output tiles     (x2 buffers)
            + 2 * padded(d, h, in_itemsize)     # resident W1 (conservatively x2)
            + 4 * padded(1, h, 4))              # resident b1, w2 (conservatively x2)
    # + compiler/internal scratch headroom; cap at v7x's 64 MiB physical VMEM.
    return int(min(need + (8 << 20), 64 << 20))


@functools.partial(jax.jit, static_argnames=("block_b", "compute_dtype"))
def critic_forward(state, w1, b1, w2, b2, *, block_b=2048, compute_dtype=None):
    """Forward pass of Critic.

    state: (B, D);  torch-layout params: w1 (H, D), b1 (H,), w2 (1, H), b2 (1,).
    Returns (B, 1) float32.  Pass bf16 `state` (or compute_dtype=jnp.bfloat16)
    to halve activation DMA traffic; accumulation stays f32.
    """
    B, D = state.shape
    H = w1.shape[0]
    in_dtype = jnp.dtype(compute_dtype) if compute_dtype is not None else state.dtype

    x = state.astype(in_dtype)                       # no-op unless compute_dtype differs
    w1_k = w1.T.astype(in_dtype)                     # (D, H), ~2 KB: negligible relayout
    b1_k = b1.reshape(1, H).astype(jnp.float32)      # (1, H)
    w2_k = w2.reshape(1, H).astype(jnp.float32)      # (1, H)
    b2_k = b2.reshape(1).astype(jnp.float32)         # (1,) scalar in SMEM

    tb = _choose_tile(B, block_b)
    grid = (pl.cdiv(B, tb),)                         # ragged last tile: masked by Pallas

    out = pl.pallas_call(
        critic_kernel,
        out_shape=jax.ShapeDtypeStruct((B, 1), jnp.float32),
        grid_spec=pl.GridSpec(
            grid=grid,
            in_specs=[
                pl.BlockSpec((tb, D), lambda i: (i, 0)),             # stream activations
                pl.BlockSpec((D, H), lambda i: (0, 0)),              # W1 resident
                pl.BlockSpec((1, H), lambda i: (0, 0)),              # b1 resident
                pl.BlockSpec((1, H), lambda i: (0, 0)),              # w2 resident
                pl.BlockSpec(memory_space=pltpu.MemorySpace.SMEM),   # b2 scalar
            ],
            out_specs=pl.BlockSpec((tb, 1), lambda i: (i, 0)),
        ),
        compiler_params=pltpu.CompilerParams(
            dimension_semantics=("parallel",),                       # batch tiles independent
            vmem_limit_bytes=_vmem_limit_bytes(tb, D, H, in_dtype.itemsize),
        ),
    )(x, w1_k, b1_k, w2_k, b2_k)

    return out


def init_critic_params(key, input_dim, hidden_dim):
    """Deterministic init mirroring nn.Linear's U(-1/sqrt(fan_in), +1/sqrt(fan_in)).

    Torch layouts: w1 (H, D), b1 (H,), w2 (1, H), b2 (1,).
    """
    k1, k2, k3, k4 = jax.random.split(key, 4)
    bound1 = 1.0 / jnp.sqrt(input_dim)
    bound2 = 1.0 / jnp.sqrt(hidden_dim)
    w1 = jax.random.uniform(k1, (hidden_dim, input_dim), jnp.float32, -bound1, bound1)
    b1 = jax.random.uniform(k2, (hidden_dim,), jnp.float32, -bound1, bound1)
    w2 = jax.random.uniform(k3, (1, hidden_dim), jnp.float32, -bound2, bound2)
    b2 = jax.random.uniform(k4, (1,), jnp.float32, -bound2, bound2)
    return w1, b1, w2, b2


def critic_reference(state, w1, b1, w2, b2, dtype=jnp.float32):
    """Plain-JAX reference; same math as the PyTorch module's forward."""
    x = state.astype(dtype)
    hidden = jnp.maximum(
        jnp.dot(x, w1.T.astype(dtype), preferred_element_type=jnp.float32) + b1[None, :],
        0.0)
    return jnp.sum(hidden * w2, axis=-1, keepdims=True) + b2


if __name__ == "__main__":
    # Small shapes consistent with the module's forward: state (batch, input_dim).
    # batch=250 deliberately not a multiple of the tile -> exercises the
    # no-pad ragged-last-tile (masked write) path.
    batch, input_dim, hidden_dim = 250, 16, 32

    key = jax.random.PRNGKey(0)
    k_state, k_params = jax.random.split(key)
    state = jax.random.normal(k_state, (batch, input_dim), dtype=jnp.float32)
    w1, b1, w2, b2 = init_critic_params(k_params, input_dim, hidden_dim)

    # 1) f32 path, block_b=128 -> 2 grid steps, second tile ragged (masked stores).
    value = critic_forward(state, w1, b1, w2, b2, block_b=128)
    value = jax.block_until_ready(value)
    ref = critic_reference(state, w1, b1, w2, b2)
    assert value.shape == (batch, 1)
    assert jnp.allclose(value, ref, atol=1e-4, rtol=1e-4), float(jnp.max(jnp.abs(value - ref)))

    # 2) bf16 activation/W1 path (caller supplies bf16 state -> halved DMA
    #    traffic), single-tile grid, f32 accumulation inside the kernel.
    state_bf16 = state.astype(jnp.bfloat16)
    value_bf16 = critic_forward(state_bf16, w1, b1, w2, b2)
    value_bf16 = jax.block_until_ready(value_bf16)
    ref_bf16 = critic_reference(state, w1, b1, w2, b2, dtype=jnp.bfloat16)
    assert value_bf16.shape == (batch, 1)
    assert jnp.allclose(value_bf16, ref_bf16, atol=1e-3, rtol=1e-3)

    print("KERNEL_OK")
</pallas_src>

<mosaic_0001>
module attributes {stable_mosaic.version = 11 : i64} {
  func.func @critic_kernel(%arg0: i32, %arg1: memref<128x16xf32, #tpu.memory_space<vmem>>, %arg2: memref<16x32xf32, #tpu.memory_space<vmem>>, %arg3: memref<1x32xf32, #tpu.memory_space<vmem>>, %arg4: memref<1x32xf32, #tpu.memory_space<vmem>>, %arg5: memref<1xf32, #tpu.memory_space<smem>>, %arg6: memref<128x1xf32, #tpu.memory_space<vmem>>) attributes {dimension_semantics = [#tpu.dimension_semantics<parallel>], iteration_bounds = array<i64: 2>, scalar_prefetch = 0 : i64, scratch_operands = 0 : i64, tpu.core_type = #tpu.core_type<tc>, window_params = [{transform_indices = @transform_0, window_bounds = array<i64: 128, 16>}, {pipeline_mode = #tpu.pipeline_mode<synchronous>, transform_indices = @transform_1, window_bounds = array<i64: 16, 32>}, {pipeline_mode = #tpu.pipeline_mode<synchronous>, transform_indices = @transform_2, window_bounds = array<i64: 1, 32>}, {pipeline_mode = #tpu.pipeline_mode<synchronous>, transform_indices = @transform_3, window_bounds = array<i64: 1, 32>}, {transform_indices = @transform_4, window_bounds = array<i64: 1>}, {transform_indices = @transform_5, window_bounds = array<i64: 128, 1>}]} {
    %c0 = arith.constant 0 : index
    %c0_0 = arith.constant 0 : index
    %0 = vector.load %arg1[%c0, %c0_0] : memref<128x16xf32, #tpu.memory_space<vmem>>, vector<128x16xf32>
    %c0_1 = arith.constant 0 : index
    %c0_2 = arith.constant 0 : index
    %1 = vector.load %arg2[%c0_1, %c0_2] : memref<16x32xf32, #tpu.memory_space<vmem>>, vector<16x32xf32>
    %cst = arith.constant dense<0.000000e+00> : vector<128x32xf32>
    %2 = tpu.matmul %0, %1, %cst {dimension_numbers = #tpu.dot_dimension_numbers<[1], [0], [0], [1], [0, 0, 1, 1], [], []>} : vector<128x16xf32>, vector<16x32xf32>, vector<128x32xf32> -> vector<128x32xf32>
    %c0_3 = arith.constant 0 : index
    %c0_4 = arith.constant 0 : index
    %3 = vector.load %arg3[%c0_3, %c0_4] : memref<1x32xf32, #tpu.memory_space<vmem>>, vector<1x32xf32>
    %4 = vector.broadcast %3 : vector<1x32xf32> to vector<128x32xf32>
    %5 = arith.addf %2, %4 : vector<128x32xf32>
    %cst_5 = arith.constant 0.000000e+00 : f32
    %6 = vector.broadcast %cst_5 : f32 to vector<128x32xf32>
    %7 = arith.maximumf %5, %6 : vector<128x32xf32>
    %c0_6 = arith.constant 0 : index
    %c0_7 = arith.constant 0 : index
    %8 = vector.load %arg4[%c0_6, %c0_7] : memref<1x32xf32, #tpu.memory_space<vmem>>, vector<1x32xf32>
    %9 = vector.broadcast %8 : vector<1x32xf32> to vector<128x32xf32>
    %10 = arith.mulf %7, %9 : vector<128x32xf32>
    %cst_8 = arith.constant dense<0.000000e+00> : vector<128xf32>
    %11 = vector.multi_reduction <add>, %10, %cst_8 [1] : vector<128x32xf32> to vector<128xf32>
    %12 = vector.shape_cast %11 : vector<128xf32> to vector<128x1xf32>
    %c0_9 = arith.constant 0 : index
    %13 = memref.load %arg5[%c0_9] : memref<1xf32, #tpu.memory_space<smem>>
    %14 = vector.broadcast %13 : f32 to vector<128x1xf32>
    %15 = arith.addf %12, %14 : vector<128x1xf32>
    %c0_10 = arith.constant 0 : index
    %c0_11 = arith.constant 0 : index
    %16 = vector.load %arg6[%c0_10, %c0_11] : memref<128x1xf32, #tpu.memory_space<vmem>>, vector<128x1xf32>
    tpu.vector_store %arg6[%c0_10, %c0_11], %15 {strides = array<i32>} : memref<128x1xf32, #tpu.memory_space<vmem>>, vector<128x1xf32>,
    return
  }
  func.func @transform_0(%arg0: i32) -> (i32, i32) {
    %c0_i32 = arith.constant 0 : i32
    %c0_i32_0 = arith.constant 0 : i32
    return %arg0, %c0_i32 : i32, i32
  }
  func.func @transform_1(%arg0: i32) -> (i32, i32) {
    %c0_i32 = arith.constant 0 : i32
    %c0_i32_0 = arith.constant 0 : i32
    %c0_i32_1 = arith.constant 0 : i32
    return %c0_i32, %c0_i32_0 : i32, i32
  }
  func.func @transform_2(%arg0: i32) -> (i32, i32) {
    %c0_i32 = arith.constant 0 : i32
    %c0_i32_0 = arith.constant 0 : i32
    %c0_i32_1 = arith.constant 0 : i32
    return %c0_i32, %c0_i32_0 : i32, i32
  }
  func.func @transform_3(%arg0: i32) -> (i32, i32) {
    %c0_i32 = arith.constant 0 : i32
    %c0_i32_0 = arith.constant 0 : i32
    %c0_i32_1 = arith.constant 0 : i32
    return %c0_i32, %c0_i32_0 : i32, i32
  }
  func.func @transform_4(%arg0: i32) -> i32 {
    %c0_i32 = arith.constant 0 : i32
    %c0_i32_0 = arith.constant 0 : i32
    return %c0_i32 : i32
  }
  func.func @transform_5(%arg0: i32) -> (i32, i32) {
    %c0_i32 = arith.constant 0 : i32
    %c0_i32_0 = arith.constant 0 : i32
    return %arg0, %c0_i32 : i32, i32
  }
}

</mosaic_0001>

<llo_original>
// kernel: critic_forward.1
$region0: #{critic_forward.1}
  #allocation0 [shape = 'u32[]', space=smem, size = 0x4, offset = 0x4, fixed_abs, tag = 'smem constant byte address 0x4 - core index']
  #allocation1 [shape = 'u32[144,128]{1,0:T(1,128)}', space=vmem, size = 0x12000, scoped, tag = 'internal scratch']
  #allocation2 [shape = 'f32[1]{0:T(128)S(6)}', space=smem, size = 0x200, scoped, tag = 'scoped memory for critic_forward.1']
  %s0 = inlined_call_operand.vmem [shape: f32[250,16], index: 0, kind: input, shape index: {}]
  %s1 = inlined_call_operand.vmem [shape: f32[16,32], index: 1, kind: input, shape index: {}]
  %s2 = inlined_call_operand.vmem [shape: f32[1,32], index: 2, kind: input, shape index: {}]
  %s3 = inlined_call_operand.vmem [shape: f32[1,32], index: 3, kind: input, shape index: {}]
  %s4 = inlined_call_operand.<no memory space> [shape: f32[1], index: 4, kind: input, shape index: {}]
  %s5 = inlined_call_operand.vmem [shape: f32[250,1], index: 5, kind: output, shape index: {}]
  %s6 = sld [smem:[#allocation0]]
  $region53: #{critic_forward.1} parent=0
    _
  %s8 = ssub.s32 1, %s6
  %s9 = scalar_select 0, %s8, %s6
  %10 = sst [smem:[#allocation2]] %s4
  loop: start=0, step=1, limit=4
  $region2: #{critic_forward.1} parent=0 // loop_pre_header
    _
  $region3: #{critic_forward.1} parent=0 // loop_header
    %s12 = sphi 0, %s16
    %p13 = scmp.ge.s32.totalorder %s12, 4
    %s22 = sphi 0, %s24
    %s25 = sphi 0, %s22
    %s26 = sphi 0, %s25
    %s42 = sphi 0, %s26
    %s46 = sphi 0, %s46
    %s48 = sphi 0, %s46
    %s49 = sphi 0, %s48
    %s63 = sphi 0, %s49
    %s67 = sphi 0, %s67
    %s69 = sphi 0, %s67
    %s70 = sphi 0, %s69
    %s84 = sphi 0, %s70
    %s88 = sphi 0, %s88
    %s90 = sphi 0, %s88
    %s91 = sphi 0, %s90
    %s105 = sphi 0, %s91
    %s109 = sphi 0, %s109
    %s111 = sphi 0, %s109
    %s112 = sphi 0, %s111
    %s126 = sphi 0, %s112
    %s132 = sphi 0, %s134
    %s135 = sphi 0, %s132
    %s136 = sphi 0, %s135
    %s152 = sphi 0, %s136
  $region4: #{critic_forward.1} parent=0 // loop_header_branch
    %15 = sbr.rel (%p13) target = $region8
  $region5: #{critic_forward.1} parent=0 // loop_body
    %s17 = ssub.s32 %s12, 1
    %s18 = ssub.s32 %s12, 2
    %s19 = sadd.s32 %s12, 1
    %s20 = ssub.s32 %s12, %s19
    %p21 = scmp.eq.s32.totalorder %s20, 0
    %s23 = sadd.s32 %s22, 1
    %s24 = scalar_select %p21, %s22, %s23
    %p27 = pneg %p21
    %p28 = scmp.eq.s32.totalorder %s12, 1
    %p29 = por %p27, %p28
    %p30 = scmp.ne.s32.totalorder %s22, %s25
    %p31 = scmp.eq.s32.totalorder %s12, 0
    %p32 = por %p30, %p31
    %p33 = scmp.ne.s32.totalorder %s22, %s25
    %p34 = scmp.eq.s32.totalorder %s17, 1
    %p35 = por %p33, %p34
    %p36 = scmp.ne.s32.totalorder %s25, %s26
    %p37 = scmp.eq.s32.totalorder %s17, 0
    %p38 = por %p36, %p37
    %p39 = scmp.ne.s32.totalorder %s25, %s26
    %p40 = scmp.eq.s32.totalorder %s18, 1
    %p41 = por %p39, %p40
    %p43 = scmp.ne.s32.totalorder %s26, %s42
    %p44 = scmp.eq.s32.totalorder %s18, 0
    %p45 = por %p43, %p44
    %s47 = sadd.s32 %s46, 1
    %p50 = scmp.eq.s32.totalorder %s12, 1
    %p51 = scmp.ne.s32.totalorder %s46, %s48
    %p52 = scmp.eq.s32.totalorder %s12, 0
    %p53 = por %p51, %p52
    %p54 = scmp.ne.s32.totalorder %s46, %s48
    %p55 = scmp.eq.s32.totalorder %s17, 1
    %p56 = por %p54, %p55
    %p57 = scmp.ne.s32.totalorder %s48, %s49
    %p58 = scmp.eq.s32.totalorder %s17, 0
    %p59 = por %p57, %p58
    %p60 = scmp.ne.s32.totalorder %s48, %s49
    %p61 = scmp.eq.s32.totalorder %s18, 1
    %p62 = por %p60, %p61
    %p64 = scmp.ne.s32.totalorder %s49, %s63
    %p65 = scmp.eq.s32.totalorder %s18, 0
    %p66 = por %p64, %p65
    %s68 = sadd.s32 %s67, 1
    %p71 = scmp.eq.s32.totalorder %s12, 1
    %p72 = scmp.ne.s32.totalorder %s67, %s69
    %p73 = scmp.eq.s32.totalorder %s12, 0
    %p74 = por %p72, %p73
    %p75 = scmp.ne.s32.totalorder %s67, %s69
    %p76 = scmp.eq.s32.totalorder %s17, 1
    %p77 = por %p75, %p76
    %p78 = scmp.ne.s32.totalorder %s69, %s70
    %p79 = scmp.eq.s32.totalorder %s17, 0
    %p80 = por %p78, %p79
    %p81 = scmp.ne.s32.totalorder %s69, %s70
    %p82 = scmp.eq.s32.totalorder %s18, 1
    %p83 = por %p81, %p82
    %p85 = scmp.ne.s32.totalorder %s70, %s84
    %p86 = scmp.eq.s32.totalorder %s18, 0
    %p87 = por %p85, %p86
    %s89 = sadd.s32 %s88, 1
    %p92 = scmp.eq.s32.totalorder %s12, 1
    %p93 = scmp.ne.s32.totalorder %s88, %s90
    %p94 = scmp.eq.s32.totalorder %s12, 0
    %p95 = por %p93, %p94
    %p96 = scmp.ne.s32.totalorder %s88, %s90
    %p97 = scmp.eq.s32.totalorder %s17, 1
    %p98 = por %p96, %p97
    %p99 = scmp.ne.s32.totalorder %s90, %s91
    %p100 = scmp.eq.s32.totalorder %s17, 0
    %p101 = por %p99, %p100
    %p102 = scmp.ne.s32.totalorder %s90, %s91
    %p103 = scmp.eq.s32.totalorder %s18, 1
    %p104 = por %p102, %p103
    %p106 = scmp.ne.s32.totalorder %s91, %s105
    %p107 = scmp.eq.s32.totalorder %s18, 0
    %p108 = por %p106, %p107
    %s110 = sadd.s32 %s109, 1
    %p113 = scmp.eq.s32.totalorder %s12, 1
    %p114 = scmp.ne.s32.totalorder %s109, %s111
    %p115 = scmp.eq.s32.totalorder %s12, 0
    %p116 = por %p114, %p115
    %p117 = scmp.ne.s32.totalorder %s109, %s111
    %p118 = scmp.eq.s32.totalorder %s17, 1
    %p119 = por %p117, %p118
    %p120 = scmp.ne.s32.totalorder %s111, %s112
    %p121 = scmp.eq.s32.totalorder %s17, 0
    %p122 = por %p120, %p121
    %p123 = scmp.ne.s32.totalorder %s111, %s112
    %p124 = scmp.eq.s32.totalorder %s18, 1
    %p125 = por %p123, %p124
    %p127 = scmp.ne.s32.totalorder %s112, %s126
    %p128 = scmp.eq.s32.totalorder %s18, 0
    %p129 = por %p127, %p128
    %s130 = ssub.s32 %s12, %s19
    %p131 = scmp.eq.s32.totalorder %s130, 0
    %s133 = sadd.s32 %s132, 1
    %s134 = scalar_select %p131, %s132, %s133
    %p137 = pneg %p131
    %p138 = scmp.eq.s32.totalorder %s12, 1
    %p139 = por %p137, %p138
    %p140 = scmp.ne.s32.totalorder %s132, %s135
    %p141 = scmp.eq.s32.totalorder %s12, 0
    %p142 = por %p140, %p141
    %p143 = scmp.ne.s32.totalorder %s132, %s135
    %p144 = scmp.eq.s32.totalorder %s17, 1
    %p145 = por %p143, %p144
    %p146 = scmp.ne.s32.totalorder %s135, %s136
    %p147 = scmp.eq.s32.totalorder %s17, 0
    %p148 = por %p146, %p147
    %p149 = scmp.ne.s32.totalorder %s135, %s136
    %p150 = scmp.eq.s32.totalorder %s18, 1
    %p151 = por %p149, %p150
    %p153 = scmp.ne.s32.totalorder %s136, %s152
    %p154 = scmp.eq.s32.totalorder %s18, 0
    %p155 = por %p153, %p154
    %p156 = scmp.le.s32.totalorder 1, %s12
    %p157 = scmp.lt.s32.totalorder %s12, 3
    %p158 = pnand %p156, %p157
    %p159 = pneg %p158
    // Predicated region
    $region9: #{critic_forward.1} parent=5 // pred_check
      _
    $region10: #{critic_forward.1} parent=5 // pred_check_branch
      %161 = sbr.rel (%p158) target = $region12
    $region11: #{critic_forward.1} parent=5 // pred_region
      %s162 = ssub.s32 %s12, 1
      // Predicated region
      $region13: #{critic_forward.1} parent=11 // pred_check
        %p163 = pneg %p59
      $region14: #{critic_forward.1} parent=11 // pred_check_branch
        %165 = sbr.rel (%p163) target = $region16
      $region15: #{critic_forward.1} parent=11 // pred_region
        _
      $region16: #{critic_forward.1} parent=11 // pred_fallthru
        _
      // Predicated region
      $region17: #{critic_forward.1} parent=11 // pred_check
        %p166 = pneg %p80
      $region18: #{critic_forward.1} parent=11 // pred_check_branch
        %168 = sbr.rel (%p166) target = $region20
      $region19: #{critic_forward.1} parent=11 // pred_region
        _
      $region20: #{critic_forward.1} parent=11 // pred_fallthru
        _
      // Predicated region
      $region21: #{critic_forward.1} parent=11 // pred_check
        %p169 = pneg %p101
      $region22: #{critic_forward.1} parent=11 // pred_check_branch
        %171 = sbr.rel (%p169) target = $region24
      $region23: #{critic_forward.1} parent=11 // pred_region
        _
      $region24: #{critic_forward.1} parent=11 // pred_fallthru
        _
      // Predicated region
      $region25: #{critic_forward.1} parent=11 // pred_check
        %p172 = pneg %p122
      $region26: #{critic_forward.1} parent=11 // pred_check_branch
        %174 = sbr.rel (%p172) target = $region28
      $region27: #{critic_forward.1} parent=11 // pred_region
        _
      $region28: #{critic_forward.1} parent=11 // pred_fallthru
        _
    $region12: #{critic_forward.1} parent=5 // pred_fallthru
      _
    %p175 = scmp.lt.s32.totalorder %s12, 2
    // Predicated region
    $region29: #{critic_forward.1} parent=5 // pred_check
      %p176 = pneg %p175
    $region30: #{critic_forward.1} parent=5 // pred_check_branch
      %178 = sbr.rel (%p176) target = $region32
    $region31: #{critic_forward.1} parent=5 // pred_region
      // Predicated region
      $region33: #{critic_forward.1} parent=31 // pred_check
        %p179 = pneg %p32
      $region34: #{critic_forward.1} parent=31 // pred_check_branch
        %181 = sbr.rel (%p179) target = $region36
      $region35: #{critic_forward.1} parent=31 // pred_region
        %s182 = smul.u32 16, %s12
        %p183 = scmp.lt.s32.totalorder %s182, 31
        %s184 = scalar_select %p183, %s182, 31
        %s185 = smul.addr %s184, 8
        %s186 = scalar_lea.vmem %s0, %s185
        %s187 = smul.u32 16, %s12
      $region36: #{critic_forward.1} parent=31 // pred_fallthru
        _
    $region32: #{critic_forward.1} parent=5 // pred_fallthru
      _
    %p188 = scmp.le.s32.totalorder 1, %s12
    %p189 = scmp.lt.s32.totalorder %s12, 3
    %p190 = pnand %p188, %p189
    %p191 = pneg %p190
    // Predicated region
    $region37: #{critic_forward.1} parent=5 // pred_check
      _
    $region38: #{critic_forward.1} parent=5 // pred_check_branch
      %193 = sbr.rel (%p190) target = $region40
    $region39: #{critic_forward.1} parent=5 // pred_region
      %s194 = ssub.s32 %s12, 1
      %s195 = smul.u32 16, %s17
      %p196 = scmp.lt.s32.totalorder %s195, 31
      %s197 = scalar_select %p196, %s195, 31
      %s198 = smul.addr %s197, 8
      %s199 = scalar_lea.vmem %s0, %s198
      %p200 = pneg %p38
      %p201 = pneg %p35
      %p202 = pneg %p59
      %p203 = pneg %p56
      %p204 = pneg %p80
      %p205 = pneg %p77
      %p206 = pneg %p101
      %p207 = pneg %p98
      %p208 = pneg %p122
      %p209 = pneg %p119
      %p210 = pneg %p148
      %p211 = pneg %p145
      %s212 = smul.u32 16, %s17
      %p213 = scmp.lt.s32.totalorder %s212, 31
      %s214 = scalar_select %p213, %s212, 31
      %s215 = smul.addr %s214, 8
      %s216 = scalar_lea.vmem %s5, %s215
      %s217 = smul.u32 16, %s17
      %p218 = scmp.lt.s32.totalorder %s217, 31
      %s219 = scalar_select %p218, %s217, 31
      %s220 = smul.addr %s219, 8
      %s221 = scalar_lea.vmem %s0, %s220
      %s222 = smul.u32 16, %s17
      %s223 = smul.u32 16, %s17
      %p224 = scmp.lt.s32.totalorder %s223, 31
      %s225 = scalar_select %p224, %s223, 31
      %s226 = smul.addr %s225, 8
      %s227 = scalar_lea.vmem %s5, %s226
      %s228 = smul.u32 16, %s17
      %v229 = vld [vmem:[%s221] sm:$0xff]
      %v230 = vld [vmem:[%s221 + $0x8] sm:$0xff]
      %v231 = vld [vmem:[%s221 + $0x10] sm:$0xff]
      %v232 = vld [vmem:[%s221 + $0x18] sm:$0xff]
      %v233 = vld [vmem:[%s221 + $0x20] sm:$0xff]
      %v234 = vld [vmem:[%s221 + $0x28] sm:$0xff]
      %v235 = vld [vmem:[%s221 + $0x30] sm:$0xff]
      %v236 = vld [vmem:[%s221 + $0x38] sm:$0xff]
      %v237 = vld [vmem:[%s221 + $0x40] sm:$0xff]
      %v238 = vld [vmem:[%s221 + $0x48] sm:$0xff]
      %v239 = vld [vmem:[%s221 + $0x50] sm:$0xff]
      %v240 = vld [vmem:[%s221 + $0x58] sm:$0xff]
      %v241 = vld [vmem:[%s221 + $0x60] sm:$0xff]
      %v242 = vld [vmem:[%s221 + $0x68] sm:$0xff]
      %v243 = vld [vmem:[%s221 + $0x70] sm:$0xff]
      %v244 = vld [vmem:[%s221 + $0x78] sm:$0xff]
      %v245 = vld [vmem:[%s1] sm:$0xff]
      %v246 = vld [vmem:[%s1 + $0x8] sm:$0xff]
      %v247 = vld [vmem:[%s2] sm:$0x1]
      %v249 = vlaneseq
      %v250 = vshrl.u32 %v249, 7
      %v251 = vsub.s32 0, %v250
      %v252 = vrot.slane %v247, %v251
      %vm254 = vcmask 130048
      %v256 = vsel %vm254, %v229, 0
      %v259 = vsel %vm254, %v230, 0
      %v262 = vsel %vm254, %v231, 0
      %v265 = vsel %vm254, %v232, 0
      %v268 = vsel %vm254, %v233, 0
      %v271 = vsel %vm254, %v234, 0
      %v274 = vsel %vm254, %v235, 0
      %v277 = vsel %vm254, %v236, 0
      %v280 = vsel %vm254, %v237, 0
      %v283 = vsel %vm254, %v238, 0
      %v286 = vsel %vm254, %v239, 0
      %v289 = vsel %vm254, %v240, 0
      %v292 = vsel %vm254, %v241, 0
      %v295 = vsel %vm254, %v242, 0
      %v298 = vsel %vm254, %v243, 0
      %v301 = vsel %vm254, %v244, 0
      %303 = vmatprep.subr.mxu0 0.0
      %304 = vmatpush1.msra.mxu0 0.0
      %305 = vmatprep.subr.mxu0 0.0
      %306 = vmatpush1.msra.mxu0 0.0
      %307 = vmatprep.subr.mxu0 0.0
      %308 = vmatpush1.msra.mxu0 0.0
      %309 = vmatprep.subr.mxu0 0.0
      %310 = vmatpush1.msra.mxu0 0.0
      %311 = vmatprep.subr.mxu0 0.0
      %312 = vmatpush1.msra.mxu0 0.0
      %313 = vmatprep.subr.mxu0 0.0
      %314 = vmatpush1.msra.mxu0 0.0
      %315 = vmatprep.subr.mxu0 0.0
      %316 = vmatpush1.msra.mxu0 0.0
      %317 = vmatprep.subr.mxu0 0.0
      %318 = vmatpush1.msra.mxu0 0.0
      %319 = vmatprep.subr.mxu0 0.0
      %320 = vmatpush1.msra.mxu0 0.0
      %321 = vmatprep.subr.mxu0 0.0
      %322 = vmatpush1.msra.mxu0 0.0
      %323 = vmatprep.subr.mxu0 0.0
      %324 = vmatpush1.msra.mxu0 0.0
      %325 = vmatprep.subr.mxu0 0.0
      %326 = vmatpush1.msra.mxu0 0.0
      %327 = vmatprep.subr.mxu0 0.0
      %328 = vmatpush1.msra.mxu0 0.0
      %329 = vmatprep.subr.mxu0 0.0
      %330 = vmatpush1.msra.mxu0 0.0
      %331 = vmatprep.subr.mxu0 0.0
      %332 = vmatpush1.msra.mxu0 %v246
      %333 = vmatprep.subr.mxu0 0.0
      %334 = vmatpush1.msra.mxu0 %v245
      %335 = vmatprep.subr.mxu0 0.0
      %336 = vmatpush2.msra.mxu0 0.0
      %337 = vmatprep.subr.mxu0 0.0
      %338 = vmatpush2.msra.mxu0 0.0
      %339 = vmatprep.subr.mxu0 0.0
      %340 = vmatpush2.msra.mxu0 0.0
      %341 = vmatprep.subr.mxu0 0.0
      %342 = vmatpush2.msra.mxu0 0.0
      %343 = vmatprep.subr.mxu0 0.0
      %344 = vmatpush2.msra.mxu0 0.0
      %345 = vmatprep.subr.mxu0 0.0
      %346 = vmatpush2.msra.mxu0 0.0
      %347 = vmatprep.subr.mxu0 0.0
      %348 = vmatpush2.msra.mxu0 0.0
      %349 = vmatprep.subr.mxu0 0.0
      %350 = vmatpush2.msra.mxu0 0.0
      %351 = vmatprep.subr.mxu0 0.0
      %352 = vmatpush2.msra.mxu0 0.0
      %353 = vmatprep.subr.mxu0 0.0
      %354 = vmatpush2.msra.mxu0 0.0
      %355 = vmatprep.subr.mxu0 0.0
      %356 = vmatpush2.msra.mxu0 0.0
      %357 = vmatprep.subr.mxu0 0.0
      %358 = vmatpush2.msra.mxu0 0.0
      %359 = vmatprep.subr.mxu0 0.0
      %360 = vmatpush2.msra.mxu0 0.0
      %361 = vmatprep.subr.mxu0 0.0
      %362 = vmatpush2.msra.mxu0 0.0
      %363 = vmatprep.subr.mxu0 0.0
      %364 = vmatpush2.msra.mxu0 0.0
      %365 = vmatprep.subr.mxu0 0.0
      %366 = vmatpush2.msra.mxu0 0.0
      %367 = vmatprep.mubr.f32.mxu0 0.0
      %368 = vmatmul.mubr.f32.gmra.mxu0 %v256
      %v369 = vpop.f32.mrf.mxu0
      %v370 = vadd.f32 %v252, %v369
      %v371 = vpop.f32.mrf.mxu0
      %372 = vmatprep.mubr.f32.mxu0 0.0
      %373 = vmatmul.mubr.f32.gmra.mxu0 %v259
      %v374 = vpop.f32.mrf.mxu0
      %v375 = vadd.f32 %v252, %v374
      %v376 = vpop.f32.mrf.mxu0
      %377 = vmatprep.mubr.f32.mxu0 0.0
      %378 = vmatmul.mubr.f32.gmra.mxu0 %v262
      %v379 = vpop.f32.mrf.mxu0
      %v380 = vadd.f32 %v252, %v379
      %v381 = vpop.f32.mrf.mxu0
      %382 = vmatprep.mubr.f32.mxu0 0.0
      %383 = vmatmul.mubr.f32.gmra.mxu0 %v265
      %v384 = vpop.f32.mrf.mxu0
      %v385 = vadd.f32 %v252, %v384
      %v386 = vpop.f32.mrf.mxu0
      %387 = vmatprep.mubr.f32.mxu0 0.0
      %388 = vmatmul.mubr.f32.gmra.mxu0 %v268
      %v389 = vpop.f32.mrf.mxu0
      %v390 = vadd.f32 %v252, %v389
      %v391 = vpop.f32.mrf.mxu0
      %392 = vmatprep.mubr.f32.mxu0 0.0
      %393 = vmatmul.mubr.f32.gmra.mxu0 %v271
      %v394 = vpop.f32.mrf.mxu0
      %v395 = vadd.f32 %v252, %v394
      %v396 = vpop.f32.mrf.mxu0
      %397 = vmatprep.mubr.f32.mxu0 0.0
      %398 = vmatmul.mubr.f32.gmra.mxu0 %v274
      %v399 = vpop.f32.mrf.mxu0
      %v400 = vadd.f32 %v252, %v399
      %v401 = vpop.f32.mrf.mxu0
      %402 = vmatprep.mubr.f32.mxu0 0.0
      %403 = vmatmul.mubr.f32.gmra.mxu0 %v277
      %v404 = vpop.f32.mrf.mxu0
      %v405 = vadd.f32 %v252, %v404
      %v406 = vpop.f32.mrf.mxu0
      %407 = vmatprep.mubr.f32.mxu0 0.0
      %408 = vmatmul.mubr.f32.gmra.mxu0 %v280
      %v409 = vpop.f32.mrf.mxu0
      %v410 = vadd.f32 %v252, %v409
      %v411 = vpop.f32.mrf.mxu0
      %412 = vmatprep.mubr.f32.mxu0 0.0
      %413 = vmatmul.mubr.f32.gmra.mxu0 %v283
      %v414 = vpop.f32.mrf.mxu0
      %v415 = vadd.f32 %v252, %v414
      %v416 = vpop.f32.mrf.mxu0
      %417 = vmatprep.mubr.f32.mxu0 0.0
      %418 = vmatmul.mubr.f32.gmra.mxu0 %v286
      %v419 = vpop.f32.mrf.mxu0
      %v420 = vadd.f32 %v252, %v419
      %v421 = vpop.f32.mrf.mxu0
      %422 = vmatprep.mubr.f32.mxu0 0.0
      %423 = vmatmul.mubr.f32.gmra.mxu0 %v289
      %v424 = vpop.f32.mrf.mxu0
      %v425 = vadd.f32 %v252, %v424
      %v426 = vpop.f32.mrf.mxu0
      %427 = vmatprep.mubr.f32.mxu0 0.0
      %428 = vmatmul.mubr.f32.gmra.mxu0 %v292
      %v429 = vpop.f32.mrf.mxu0
      %v430 = vadd.f32 %v252, %v429
      %v431 = vpop.f32.mrf.mxu0
      %432 = vmatprep.mubr.f32.mxu0 0.0
      %433 = vmatmul.mubr.f32.gmra.mxu0 %v295
      %v434 = vpop.f32.mrf.mxu0
      %v435 = vadd.f32 %v252, %v434
      %v436 = vpop.f32.mrf.mxu0
      %437 = vmatprep.mubr.f32.mxu0 0.0
      %438 = vmatmul.mubr.f32.gmra.mxu0 %v298
      %v439 = vpop.f32.mrf.mxu0
      %v440 = vadd.f32 %v252, %v439
      %v441 = vpop.f32.mrf.mxu0
      %442 = vmatprep.mubr.f32.mxu0 0.0
      %443 = vmatmul.mubr.f32.gmra.mxu0 %v301
      %v444 = vpop.f32.mrf.mxu0
      %v445 = vadd.f32 %v252, %v444
      %v446 = vpop.f32.mrf.mxu0
      %447 = vdwg.mxu0
      %v448 = vmax.f32 %v370, 0.0
      %v449 = vmax.f32 %v375, 0.0
      %v450 = vmax.f32 %v380, 0.0
      %v451 = vmax.f32 %v385, 0.0
      %v452 = vmax.f32 %v390, 0.0
      %v453 = vmax.f32 %v395, 0.0
      %v454 = vmax.f32 %v400, 0.0
      %v455 = vmax.f32 %v405, 0.0
      %v456 = vmax.f32 %v410, 0.0
      %v457 = vmax.f32 %v415, 0.0
      %v458 = vmax.f32 %v420, 0.0
      %v459 = vmax.f32 %v425, 0.0
      %v460 = vmax.f32 %v430, 0.0
      %v461 = vmax.f32 %v435, 0.0
      %v462 = vmax.f32 %v440, 0.0
      %v463 = vmax.f32 %v445, 0.0
      %v464 = vld [vmem:[%s3] sm:$0x1]
      %v466 = vlaneseq
      %v467 = vshrl.u32 %v466, 7
      %v468 = vsub.s32 0, %v467
      %v469 = vrot.slane %v464, %v468
      %v471 = vmul.f32 %v448, %v469
      %v472 = vmul.f32 %v449, %v469
      %v473 = vmul.f32 %v450, %v469
      %v474 = vmul.f32 %v451, %v469
      %v475 = vmul.f32 %v452, %v469
      %v476 = vmul.f32 %v453, %v469
      %v477 = vmul.f32 %v454, %v469
      %v478 = vmul.f32 %v455, %v469
      %v479 = vmul.f32 %v456, %v469
      %v480 = vmul.f32 %v457, %v469
      %v481 = vmul.f32 %v458, %v469
      %v482 = vmul.f32 %v459, %v469
      %v483 = vmul.f32 %v460, %v469
      %v484 = vmul.f32 %v461, %v469
      %v485 = vmul.f32 %v462, %v469
      %v486 = vmul.f32 %v463, %v469
      %vm487 = vcmask 261120
      %v488 = vsel %vm487, %v471, 0.0
      %489 = vadd.xlane.f32.xlu0 %v488
      %v490 = vpop.xlane.xlu0 %489
      %v491 = vsel %vm487, %v472, 0.0
      %492 = vadd.xlane.f32.xlu0 %v491
      %v493 = vpop.xlane.xlu0 %492
      %v494 = vsel %vm487, %v473, 0.0
      %495 = vadd.xlane.f32.xlu0 %v494
      %v496 = vpop.xlane.xlu0 %495
      %v497 = vsel %vm487, %v474, 0.0
      %498 = vadd.xlane.f32.xlu0 %v497
      %v499 = vpop.xlane.xlu0 %498
      %v500 = vsel %vm487, %v475, 0.0
      %501 = vadd.xlane.f32.xlu0 %v500
      %v502 = vpop.xlane.xlu0 %501
      %v503 = vsel %vm487, %v476, 0.0
      %504 = vadd.xlane.f32.xlu0 %v503
      %v505 = vpop.xlane.xlu0 %504
      %v506 = vsel %vm487, %v477, 0.0
      %507 = vadd.xlane.f32.xlu0 %v506
      %v508 = vpop.xlane.xlu0 %507
      %v509 = vsel %vm487, %v478, 0.0
      %510 = vadd.xlane.f32.xlu0 %v509
      %v511 = vpop.xlane.xlu0 %510
      %v512 = vsel %vm487, %v479, 0.0
      %513 = vadd.xlane.f32.xlu0 %v512
      %v514 = vpop.xlane.xlu0 %513
      %v515 = vsel %vm487, %v480, 0.0
      %516 = vadd.xlane.f32.xlu0 %v515
      %v517 = vpop.xlane.xlu0 %516
      %v518 = vsel %vm487, %v481, 0.0
      %519 = vadd.xlane.f32.xlu0 %v518
      %v520 = vpop.xlane.xlu0 %519
      %v521 = vsel %vm487, %v482, 0.0
      %522 = vadd.xlane.f32.xlu0 %v521
      %v523 = vpop.xlane.xlu0 %522
      %v524 = vsel %vm487, %v483, 0.0
      %525 = vadd.xlane.f32.xlu0 %v524
      %v526 = vpop.xlane.xlu0 %525
      %v527 = vsel %vm487, %v484, 0.0
      %528 = vadd.xlane.f32.xlu0 %v527
      %v529 = vpop.xlane.xlu0 %528
      %v530 = vsel %vm487, %v485, 0.0
      %531 = vadd.xlane.f32.xlu0 %v530
      %v532 = vpop.xlane.xlu0 %531
      %v533 = vsel %vm487, %v486, 0.0
      %534 = vadd.xlane.f32.xlu0 %v533
      %v535 = vpop.xlane.xlu0 %534
      %s536 = sld [smem:[#allocation2]]
      %v537 = vstv %s536
      %v538 = vadd.f32 %v490, %v537
      %v539 = vadd.f32 %v493, %v537
      %v540 = vadd.f32 %v496, %v537
      %v541 = vadd.f32 %v499, %v537
      %v542 = vadd.f32 %v502, %v537
      %v543 = vadd.f32 %v505, %v537
      %v544 = vadd.f32 %v508, %v537
      %v545 = vadd.f32 %v511, %v537
      %v546 = vadd.f32 %v514, %v537
      %v547 = vadd.f32 %v517, %v537
      %v548 = vadd.f32 %v520, %v537
      %v549 = vadd.f32 %v523, %v537
      %v550 = vadd.f32 %v526, %v537
      %v551 = vadd.f32 %v529, %v537
      %v552 = vadd.f32 %v532, %v537
      %v553 = vadd.f32 %v535, %v537
      %vm554 = vcmask 7168
      %555 = vst.msk [vmem:[%s227] sm:$0xff] %vm554, %v538
      %556 = vst.msk [vmem:[%s227 + $0x8] sm:$0xff] %vm554, %v539
      %557 = vst.msk [vmem:[%s227 + $0x10] sm:$0xff] %vm554, %v540
      %558 = vst.msk [vmem:[%s227 + $0x18] sm:$0xff] %vm554, %v541
      %559 = vst.msk [vmem:[%s227 + $0x20] sm:$0xff] %vm554, %v542
      %560 = vst.msk [vmem:[%s227 + $0x28] sm:$0xff] %vm554, %v543
      %561 = vst.msk [vmem:[%s227 + $0x30] sm:$0xff] %vm554, %v544
      %562 = vst.msk [vmem:[%s227 + $0x38] sm:$0xff] %vm554, %v545
      %563 = vst.msk [vmem:[%s227 + $0x40] sm:$0xff] %vm554, %v546
      %564 = vst.msk [vmem:[%s227 + $0x48] sm:$0xff] %vm554, %v547
      %565 = vst.msk [vmem:[%s227 + $0x50] sm:$0xff] %vm554, %v548
      %566 = vst.msk [vmem:[%s227 + $0x58] sm:$0xff] %vm554, %v549
      %567 = vst.msk [vmem:[%s227 + $0x60] sm:$0xff] %vm554, %v550
      %568 = vst.msk [vmem:[%s227 + $0x68] sm:$0xff] %vm554, %v551
      %569 = vst.msk [vmem:[%s227 + $0x70] sm:$0xff] %vm554, %v552
      %570 = vst.msk [vmem:[%s227 + $0x78] sm:$0xff] %vm554, %v553
      %s571 = smul.u32 16, %s17
      %p572 = scmp.lt.s32.totalorder %s571, 31
      %s573 = scalar_select %p572, %s571, 31
      %s574 = smul.addr %s573, 8
      %s575 = scalar_lea.vmem %s5, %s574
      // Predicated region
      $region41: #{critic_forward.1} parent=39 // pred_check
        %p576 = pneg %p145
      $region42: #{critic_forward.1} parent=39 // pred_check_branch
        %578 = sbr.rel (%p576) target = $region44
      $region43: #{critic_forward.1} parent=39 // pred_region
        %s579 = smul.u32 16, %s17
      $region44: #{critic_forward.1} parent=39 // pred_fallthru
        _
    $region40: #{critic_forward.1} parent=5 // pred_fallthru
      _
    %p580 = scmp.le.s32.totalorder 2, %s12
    // Predicated region
    $region45: #{critic_forward.1} parent=5 // pred_check
      %p581 = pneg %p580
    $region46: #{critic_forward.1} parent=5 // pred_check_branch
      %583 = sbr.rel (%p581) target = $region48
    $region47: #{critic_forward.1} parent=5 // pred_region
      %s584 = ssub.s32 %s12, 2
      // Predicated region
      $region49: #{critic_forward.1} parent=47 // pred_check
        %p585 = pneg %p151
      $region50: #{critic_forward.1} parent=47 // pred_check_branch
        %587 = sbr.rel (%p585) target = $region52
      $region51: #{critic_forward.1} parent=47 // pred_region
        %s588 = smul.u32 16, %s18
        %p589 = scmp.lt.s32.totalorder %s588, 31
        %s590 = scalar_select %p589, %s588, 31
        %s591 = smul.addr %s590, 8
        %s592 = scalar_lea.vmem %s5, %s591
      $region52: #{critic_forward.1} parent=47 // pred_fallthru
        _
    $region48: #{critic_forward.1} parent=5 // pred_fallthru
      _
  $region6: #{critic_forward.1} parent=0 // loop_footer
    %s16 = sadd.s32 1, %s12
  $region7: #{critic_forward.1} parent=0 // loop_footer_branch
    %11 = sbr.rel target = $region3
  $region8: #{critic_forward.1} parent=0 // loop_exit
    _

</llo_original>
